<compile_context>
chip_gen: v7x
topology: tpu7x:2x2x1
jax: 0.10.0
libtpu: 0.0.40
codegen_flags: <defaults>
</compile_context>

<pallas_src>
import functools

import jax
import jax.numpy as jnp
from jax.experimental import pallas as pl
from jax.experimental.pallas import tpu as pltpu


def _round_up(v: int, m: int) -> int:
    return (v + m - 1) // m * m


def _one_hot_ce_kernel(x_ref, y_ref, out_ref, acc_ref, *,
                       total_batch: int, width: int,
                       need_col_mask: bool, need_row_mask: bool):
    i = pl.program_id(0)

    @pl.when(i == 0)
    def _init():
        acc_ref[...] = jnp.zeros_like(acc_ref)

    x = x_ref[...].astype(jnp.float32)
    y = y_ref[...].astype(jnp.float32)
    tb, fb = x.shape

    # y * log(x + eps); log goes to the EUP and hides under the DMA.
    term = y * jnp.log(x + jnp.float32(1e-07))

    # Mask columns >= 2*num_classes only if the feature block carries any
    # (trace-time gate -> no per-element work in the common F == 2C case).
    if need_col_mask:
        col = jax.lax.broadcasted_iota(jnp.int32, (tb, fb), 1)
        term = jnp.where(col < width, term, 0.0)

    # Mask padded rows of the last (partial) batch tile.
    if need_row_mask:
        row = jax.lax.broadcasted_iota(jnp.int32, (tb, fb), 0) + i * tb
        term = jnp.where(row < total_batch, term, 0.0)

    # Element-wise running sum (VPU only); no per-iteration XLU reduction.
    acc_ref[...] += term

    @pl.when(i == pl.num_programs(0) - 1)
    def _finalize():
        # Single reduction + normalize by the FULL batch, negated.
        out_ref[0, 0] = jnp.sum(acc_ref[...]) * jnp.float32(-1.0 / total_batch)


def one_hot_cross_entropy(x, y, num_classes: int):
    """Pallas equivalent of one_hot_CrossEntropy().forward(x, y, num_classes)."""
    assert x.shape == y.shape and x.ndim == 2
    B, F = x.shape
    width = 2 * num_classes
    assert F >= width

    # ---- feature block: only read the columns we actually use -------------
    if F == width:
        fb, need_col_mask = F, False
    elif width % 128 == 0:
        fb, need_col_mask = width, False            # lane-aligned, no mask
    else:
        fb_rounded = _round_up(width, 128)
        if fb_rounded <= F:
            fb, need_col_mask = fb_rounded, True    # mask only the ragged lanes
        else:
            fb, need_col_mask = F, True             # array too narrow to round

    # ---- batch tile: ~4 MiB per input block, safe on v5e/v6e/v7x ----------
    if B <= 1024:
        tb = B                                      # full dim -> always legal
    else:
        bytes_per_row = fb * 4
        tb = max(8, min(1024, (4 * 1024 * 1024) // max(bytes_per_row, 1)))
        tb = (tb // 8) * 8                          # sublane alignment

    num_tiles = pl.cdiv(B, tb)
    need_row_mask = (num_tiles * tb != B)

    kernel = functools.partial(
        _one_hot_ce_kernel,
        total_batch=B,
        width=width,
        need_col_mask=need_col_mask,
        need_row_mask=need_row_mask,
    )

    grid_spec = pltpu.PrefetchScalarGridSpec(
        num_scalar_prefetch=0,
        grid=(num_tiles,),
        in_specs=[
            pl.BlockSpec((tb, fb), lambda i: (i, 0)),
            pl.BlockSpec((tb, fb), lambda i: (i, 0)),
        ],
        out_specs=pl.BlockSpec(memory_space=pltpu.MemorySpace.SMEM),
        scratch_shapes=[pltpu.VMEM((tb, fb), jnp.float32)],
    )

    out = pl.pallas_call(
        kernel,
        out_shape=jax.ShapeDtypeStruct((1, 1), jnp.float32),
        grid_spec=grid_spec,
        compiler_params=pltpu.CompilerParams(
            dimension_semantics=("arbitrary",),          # reduction axis
            vmem_limit_bytes=48 * 1024 * 1024,
        ),
    )(x, y)
    return out[0, 0]


def _reference(x, y, num_classes):
    c = num_classes
    la = -jnp.mean(jnp.sum(y[:, 0:c] * jnp.log(x[:, 0:c] + 1e-07), axis=1))
    lb = -jnp.mean(jnp.sum(y[:, c:2 * c] * jnp.log(x[:, c:2 * c] + 1e-07), axis=1))
    return la + lb


def _make_inputs(key, batch, num_classes, feat):
    k1, k2, k3 = jax.random.split(key, 3)
    x = jax.nn.softmax(jax.random.normal(k1, (batch, feat), dtype=jnp.float32),
                       axis=-1)
    labels_a = jax.random.randint(k2, (batch,), 0, num_classes)
    labels_b = jax.random.randint(k3, (batch,), 0, num_classes)
    y_cls = jnp.concatenate(
        [jax.nn.one_hot(labels_a, num_classes, dtype=jnp.float32),
         jax.nn.one_hot(labels_b, num_classes, dtype=jnp.float32)],
        axis=1,
    )
    if feat > 2 * num_classes:
        y = jnp.concatenate(
            [y_cls, jnp.zeros((batch, feat - 2 * num_classes), jnp.float32)],
            axis=1,
        )
    else:
        y = y_cls
    return x, y


if __name__ == "__main__":
    key = jax.random.PRNGKey(0)
    k_small, k_big = jax.random.split(key)

    # Case 1: small shape matching the module spec (F == 2 * num_classes).
    batch, num_classes = 8, 5
    x1, y1 = _make_inputs(k_small, batch, num_classes, 2 * num_classes)
    loss1 = jax.block_until_ready(one_hot_cross_entropy(x1, y1, num_classes))
    ref1 = _reference(x1, y1, num_classes)
    assert jnp.allclose(loss1, ref1, rtol=1e-5, atol=1e-5), (loss1, ref1)

    # Case 2: exercises batch tiling + partial-last-tile row mask + column
    # mask (F > 2 * num_classes, B not a multiple of the row tile).
    batch2, num_classes2, feat2 = 1000, 5, 16
    x2, y2 = _make_inputs(k_big, batch2, num_classes2, feat2)
    loss2 = jax.block_until_ready(one_hot_cross_entropy(x2, y2, num_classes2))
    ref2 = _reference(x2, y2, num_classes2)
    assert jnp.allclose(loss2, ref2, rtol=1e-4, atol=1e-4), (loss2, ref2)

    print("KERNEL_OK")
</pallas_src>

<mosaic_0001>
module attributes {stable_mosaic.version = 11 : i64} {
  func.func @_one_hot_ce_kernel(%arg0: i32, %arg1: memref<8x10xf32, #tpu.memory_space<vmem>>, %arg2: memref<8x10xf32, #tpu.memory_space<vmem>>, %arg3: memref<1x1xf32, #tpu.memory_space<smem>>, %arg4: memref<8x10xf32, #tpu.memory_space<vmem>>) attributes {dimension_semantics = [#tpu.dimension_semantics<arbitrary>], iteration_bounds = array<i64: 1>, scalar_prefetch = 0 : i64, scratch_operands = 1 : i64, tpu.core_type = #tpu.core_type<tc>, window_params = [{transform_indices = @transform_0, window_bounds = array<i64: 8, 10>}, {transform_indices = @transform_1, window_bounds = array<i64: 8, 10>}, {transform_indices = @transform_2, window_bounds = array<i64: 1, 1>}]} {
    %c0_i32 = arith.constant 0 : i32
    %0 = arith.cmpi eq, %arg0, %c0_i32 : i32
    %1 = arith.extui %0 : i1 to i32
    %c0_i32_0 = arith.constant 0 : i32
    %2 = arith.cmpi ne, %1, %c0_i32_0 : i32
    scf.if %2 {
      %cst_10 = arith.constant 0.000000e+00 : f32
      %15 = vector.broadcast %cst_10 : f32 to vector<8x10xf32>
      %c0_11 = arith.constant 0 : index
      %c0_12 = arith.constant 0 : index
      %16 = vector.load %arg4[%c0_11, %c0_12] : memref<8x10xf32, #tpu.memory_space<vmem>>, vector<8x10xf32>
      tpu.vector_store %arg4[%c0_11, %c0_12], %15 {strides = array<i32>} : memref<8x10xf32, #tpu.memory_space<vmem>>, vector<8x10xf32>,
    } else {
    }
    %c0 = arith.constant 0 : index
    %c0_1 = arith.constant 0 : index
    %3 = vector.load %arg1[%c0, %c0_1] : memref<8x10xf32, #tpu.memory_space<vmem>>, vector<8x10xf32>
    %c0_2 = arith.constant 0 : index
    %c0_3 = arith.constant 0 : index
    %4 = vector.load %arg2[%c0_2, %c0_3] : memref<8x10xf32, #tpu.memory_space<vmem>>, vector<8x10xf32>
    %cst = arith.constant 1.000000e-07 : f32
    %5 = vector.broadcast %cst : f32 to vector<8x10xf32>
    %6 = arith.addf %3, %5 : vector<8x10xf32>
    %7 = math.log %6 : vector<8x10xf32>
    %8 = arith.mulf %4, %7 : vector<8x10xf32>
    %c0_4 = arith.constant 0 : index
    %c0_5 = arith.constant 0 : index
    %9 = vector.load %arg4[%c0_4, %c0_5] : memref<8x10xf32, #tpu.memory_space<vmem>>, vector<8x10xf32>
    %10 = arith.addf %9, %8 : vector<8x10xf32>
    %c0_6 = arith.constant 0 : index
    %c0_7 = arith.constant 0 : index
    %11 = vector.load %arg4[%c0_6, %c0_7] : memref<8x10xf32, #tpu.memory_space<vmem>>, vector<8x10xf32>
    tpu.vector_store %arg4[%c0_6, %c0_7], %10 {strides = array<i32>} : memref<8x10xf32, #tpu.memory_space<vmem>>, vector<8x10xf32>,
    %c0_i32_8 = arith.constant 0 : i32
    %12 = arith.cmpi eq, %arg0, %c0_i32_8 : i32
    %13 = arith.extui %12 : i1 to i32
    %c0_i32_9 = arith.constant 0 : i32
    %14 = arith.cmpi ne, %13, %c0_i32_9 : i32
    scf.if %14 {
      %c0_10 = arith.constant 0 : index
      %c0_11 = arith.constant 0 : index
      %15 = vector.load %arg4[%c0_10, %c0_11] : memref<8x10xf32, #tpu.memory_space<vmem>>, vector<8x10xf32>
      %16 = vector.shape_cast %15 : vector<8x10xf32> to vector<1x8x10xf32>
      %cst_12 = arith.constant dense<0.000000e+00> : vector<1xf32>
      %17 = vector.multi_reduction <add>, %16, %cst_12 [1, 2] : vector<1x8x10xf32> to vector<1xf32>
      %18 = vector.shape_cast %17 : vector<1xf32> to vector<1x1x1xf32>
      %19 = vector.extract %18[0, 0, 0] : f32 from vector<1x1x1xf32>
      %cst_13 = arith.constant -1.250000e-01 : f32
      %20 = arith.mulf %19, %cst_13 : f32
      %c0_14 = arith.constant 0 : index
      %c0_15 = arith.constant 0 : index
      %21 = memref.load %arg3[%c0_14, %c0_15] : memref<1x1xf32, #tpu.memory_space<smem>>
      memref.store %20, %arg3[%c0_14, %c0_15] : memref<1x1xf32, #tpu.memory_space<smem>>
    } else {
    }
    return
  }
  func.func @transform_0(%arg0: i32) -> (i32, i32) {
    %c0_i32 = arith.constant 0 : i32
    %c0_i32_0 = arith.constant 0 : i32
    return %arg0, %c0_i32 : i32, i32
  }
  func.func @transform_1(%arg0: i32) -> (i32, i32) {
    %c0_i32 = arith.constant 0 : i32
    %c0_i32_0 = arith.constant 0 : i32
    return %arg0, %c0_i32 : i32, i32
  }
  func.func @transform_2(%arg0: i32) -> (i32, i32) {
    %c0_i32 = arith.constant 0 : i32
    %c0_i32_0 = arith.constant 0 : i32
    %c0_i32_1 = arith.constant 0 : i32
    return %c0_i32, %c0_i32_0 : i32, i32
  }
}

</mosaic_0001>

<llo_original>
// kernel: tpu_custom_call.1
$region0: #{tpu_custom_call.1}
  #allocation0 [shape = 'u32[]', space=smem, size = 0x4, offset = 0x4, fixed_abs, tag = 'smem constant byte address 0x4 - core index']
  #allocation1 [shape = 'u32[144,128]{1,0:T(1,128)}', space=vmem, size = 0x12000, scoped, tag = 'internal scratch']
  #allocation2 [shape = 'f32[8,10]{1,0:T(8,128)}', space=vmem, size = 0x1000, scoped, tag = 'scratch operand']
  %s0 = inlined_call_operand.hbm [shape: f32[8,10], index: 0, kind: input, shape index: {}]
  %s1 = inlined_call_operand.hbm [shape: f32[8,10], index: 1, kind: input, shape index: {}]
  %s2 = inlined_call_operand.hbm [shape: f32[1,1], index: 2, kind: output, shape index: {}]
  %s3 = sld [smem:[#allocation0]]
  $region34: #{tpu_custom_call.1} parent=0
    _
  %s5 = ssub.s32 1, %s3
  %s6 = scalar_select 0, %s5, %s3
  $region1: #{tpu_custom_call.1} parent=0
    #allocation3 [shape = 'u8[4096]{0}', space=vmem, size = 0x1000, scoped, tag = 'input window, operand 0, single buffered']
    #allocation4 [shape = 's32[1]{0}', space=sflag, size = 0x4, scoped, tag = 'scoped memory for tpu_custom_call.1']
    #allocation5 [shape = 's32[1]{0}', space=sflag, size = 0x4, scoped, tag = 'scoped memory for tpu_custom_call.1']
    #allocation6 [shape = 'u8[4096]{0}', space=vmem, size = 0x1000, scoped, tag = 'input window, operand 1, single buffered']
    #allocation7 [shape = 's32[1]{0}', space=sflag, size = 0x4, scoped, tag = 'scoped memory for tpu_custom_call.1']
    #allocation8 [shape = 'u8[512]{0}', space=smem, size = 0x200, scoped, tag = 'output window, operand 0, single buffered']
    %7 = vsyncpa [#allocation4], 0
    %8 = vsyncpa [#allocation7], 0
    %9 = vsyncpa [#allocation5], 0
    // Predicated region
    $region2: #{tpu_custom_call.1} parent=1 // pred_check
      _
    $region3: #{tpu_custom_call.1} parent=1 // pred_check_branch
      %11 = sbr.rel (0) target = $region5
    $region4: #{tpu_custom_call.1} parent=1 // pred_region
      %s13 = ssub.s32 128, 128
      %14 = vsyncadd [#allocation4], %s13
      %s16 = sshll.u32 [#allocation3], 4
      %s17 = int_to_ptr.vmem [resolvable:$true] %s16
      %19 = dma.hbm_to_vmem [thread:$0]  %s0, 128, %s17, [#allocation4]
    $region5: #{tpu_custom_call.1} parent=1 // pred_fallthru
      _
    // Predicated region
    $region6: #{tpu_custom_call.1} parent=1 // pred_check
      _
    $region7: #{tpu_custom_call.1} parent=1 // pred_check_branch
      %21 = sbr.rel (0) target = $region9
    $region8: #{tpu_custom_call.1} parent=1 // pred_region
      %s23 = ssub.s32 128, 128
      %24 = vsyncadd [#allocation7], %s23
      %s26 = sshll.u32 [#allocation6], 4
      %s27 = int_to_ptr.vmem [resolvable:$true] %s26
      %29 = dma.hbm_to_vmem [thread:$0]  %s1, 128, %s27, [#allocation7]
    $region9: #{tpu_custom_call.1} parent=1 // pred_fallthru
      _
    // Predicated region
    $region10: #{tpu_custom_call.1} parent=1 // pred_check
      _
    $region11: #{tpu_custom_call.1} parent=1 // pred_check_branch
      %31 = sbr.rel (0) target = $region13
    $region12: #{tpu_custom_call.1} parent=1 // pred_region
      %32 = dma.done [#allocation4], 128
    $region13: #{tpu_custom_call.1} parent=1 // pred_fallthru
      _
    // Predicated region
    $region14: #{tpu_custom_call.1} parent=1 // pred_check
      _
    $region15: #{tpu_custom_call.1} parent=1 // pred_check_branch
      %34 = sbr.rel (0) target = $region17
    $region16: #{tpu_custom_call.1} parent=1 // pred_region
      %35 = dma.done [#allocation7], 128
    $region17: #{tpu_custom_call.1} parent=1 // pred_fallthru
      _
    %p36 = scmp.eq.s32.totalorder 0, 0
    // Predicated region
    $region18: #{tpu_custom_call.1} parent=1 // pred_check
      %p37 = pneg %p36
    $region19: #{tpu_custom_call.1} parent=1 // pred_check_branch
      %39 = sbr.rel (%p37) target = $region21
    $region20: #{tpu_custom_call.1} parent=1 // pred_region
      %vm40 = vcmask 80896
      %41 = vst.msk [vmem:[#allocation2] sm:$0xff] %vm40, 0.0
    $region21: #{tpu_custom_call.1} parent=1 // pred_fallthru
      _
    %v42 = vld [vmem:[#allocation3] sm:$0xff]
    %v43 = vld [vmem:[#allocation6] sm:$0xff]
    %v44 = vadd.f32 %v42, 1e-07
    %v45 = vlog2.pop %v44
    %v46 = vmul.f32 %v45, 0.6931472
    %v47 = vmul.f32 %v43, %v46
    %v48 = vld [vmem:[#allocation2] sm:$0xff]
    %v49 = vadd.f32 %v48, %v47
    %vm50 = vcmask 80896
    %51 = vst.msk [vmem:[#allocation2] sm:$0xff] %vm50, %v49
    // Predicated region
    $region22: #{tpu_custom_call.1} parent=1 // pred_check
      %p52 = pneg %p36
    $region23: #{tpu_custom_call.1} parent=1 // pred_check_branch
      %54 = sbr.rel (%p52) target = $region25
    $region24: #{tpu_custom_call.1} parent=1 // pred_region
      %v55 = vld [vmem:[#allocation2] sm:$0xff]
      %v56 = vsel %vm50, %v55, 0.0
      %57 = vadd.xlane.f32.xlu0 %v56
      %v58 = vpop.xlane.xlu0 %57
      %v59 = vrot.slane %v58, 4
      %v60 = vadd.f32 %v58, %v59
      %v61 = vrot.slane %v60, 2
      %v62 = vadd.f32 %v60, %v61
      %v63 = vrot.slane %v62, 1
      %v64 = vadd.f32 %v62, %v63
      %s65 = vtos %v64
      %s66 = smul.f32 %s65, -0.125
      %s67 = scalar_lea.smem [#allocation8], 0
      %68 = sst [smem:[%s67]] %s66
    $region25: #{tpu_custom_call.1} parent=1 // pred_fallthru
      _
    // Predicated region
    $region26: #{tpu_custom_call.1} parent=1 // pred_check
      _
    $region27: #{tpu_custom_call.1} parent=1 // pred_check_branch
      %70 = sbr.rel (0) target = $region29
    $region28: #{tpu_custom_call.1} parent=1 // pred_region
      %s72 = ssub.s32 16, 16
      %73 = vsyncadd [#allocation5], %s72
      %76 = dma.smem_to_hbm [#allocation8], 16, %s2, [#allocation5]
    $region29: #{tpu_custom_call.1} parent=1 // pred_fallthru
      _
    // Predicated region
    $region30: #{tpu_custom_call.1} parent=1 // pred_check
      _
    $region31: #{tpu_custom_call.1} parent=1 // pred_check_branch
      %78 = sbr.rel (0) target = $region33
    $region32: #{tpu_custom_call.1} parent=1 // pred_region
      %79 = dma.done [#allocation5], 16
    $region33: #{tpu_custom_call.1} parent=1 // pred_fallthru
      _
    %80 = sfence
    %81 = vsyncpa [#allocation4], 1
    %82 = vsyncpa [#allocation7], 1
    %83 = vsyncpa [#allocation5], 1

</llo_original>
